<compile_context>
chip_gen: v7x
topology: tpu7x:2x2x1
jax: 0.10.0
libtpu: 0.0.40
codegen_flags: <defaults>
</compile_context>

<pallas_src>
import jax
import jax.numpy as jnp
from jax.experimental import pallas as pl
from jax.experimental.pallas import tpu as pltpu


# ---------------------------------------------------------------------------
# helpers
# ---------------------------------------------------------------------------
def _round_up(x: int, m: int) -> int:
    return ((x + m - 1) // m) * m


def _pad_dim_lane(d: int) -> int:
    """Pad an N/K dim: 128 minimum (lane width), 256 granularity above that so the
    2x256x256 MXU on v6e/v7x is fully fed."""
    p = _round_up(d, 128)
    if p > 128:
        p = _round_up(d, 256)
    return p


def _pick_tile(dim_pad: int, cap: int, gran: int) -> int:
    """Largest multiple of `gran`, <= cap, that divides dim_pad (dim_pad is already a
    multiple of gran), so tiles always divide the padded array exactly."""
    t = min(cap, dim_pad)
    t = (t // gran) * gran
    while t > gran and dim_pad % t != 0:
        t -= gran
    return max(t, gran)


def _tile_caps():
    """Generation-aware tile caps (tm, tn, tk)."""
    try:
        info = pltpu.get_tpu_info()
        vmem = int(getattr(info, "vmem_capacity_bytes", 0) or 0)
        if vmem >= (100 << 20):          # v5e / v6e: 128 MiB physical VMEM
            return 1024, 1024, 1024
    except Exception:
        pass
    return 512, 512, 1024                # v7x (64 MiB VMEM) / unknown: safe baseline


# ---------------------------------------------------------------------------
# kernels
# ---------------------------------------------------------------------------
def _linear_kernel_f32(x_ref, w_ref, b_ref, o_ref):
    """f32 output: accumulate directly into the resident output block (no scratch,
    no epilogue copy). Bias folded into the k==0 write."""
    k = pl.program_id(2)
    part = jnp.dot(x_ref[...], w_ref[...], preferred_element_type=jnp.float32)

    @pl.when(k == 0)
    def _():
        o_ref[...] = part + b_ref[...]

    @pl.when(k > 0)
    def _():
        o_ref[...] += part


def _linear_kernel_acc(x_ref, w_ref, b_ref, o_ref, acc_ref):
    """Non-f32 output: f32 VMEM accumulator, bias-add + cast once in the epilogue."""
    k = pl.program_id(2)

    @pl.when(k == 0)
    def _():
        acc_ref[...] = jnp.zeros_like(acc_ref)

    acc_ref[...] += jnp.dot(x_ref[...], w_ref[...], preferred_element_type=jnp.float32)

    @pl.when(k == pl.num_programs(2) - 1)
    def _():
        o_ref[...] = (acc_ref[...] + b_ref[...]).astype(o_ref.dtype)


# ---------------------------------------------------------------------------
# wrapper
# ---------------------------------------------------------------------------
def prepare_linear_params(weight, bias):
    """Do-once parameter prep (hoisted out of the per-call path).

    weight: (OUT, IN) PyTorch layout, bias: (OUT,)
    Returns (w_p: (IN_pad, OUT_pad) pre-transposed/padded, b_p: (1, OUT_pad), OUT).
    """
    OUT, IN = weight.shape
    IN_pad = _pad_dim_lane(IN)
    OUT_pad = _pad_dim_lane(OUT)

    w_p = weight.T                                    # (IN, OUT) -- transposed ONCE
    if (IN_pad, OUT_pad) != (IN, OUT):
        w_p = jnp.pad(w_p, ((0, IN_pad - IN), (0, OUT_pad - OUT)))
    b_p = bias
    if OUT_pad != OUT:
        b_p = jnp.pad(bias, (0, OUT_pad - OUT))
    b_p = b_p.reshape(1, OUT_pad)
    return w_p, b_p, OUT


def linear_forward_prepared(x, w_p, b_p, out_features):
    """x: (B, IN); w_p: (IN_pad, OUT_pad) from prepare_linear_params; b_p: (1, OUT_pad).
    Returns (B, out_features) = x @ W^T + b."""
    B, IN = x.shape
    IN_pad, OUT_pad = w_p.shape
    assert IN <= IN_pad, "x in_features exceed prepared weight"

    tm_cap, tn_cap, tk_cap = _tile_caps()

    B_pad = _round_up(B, 8)

    # Divisor-based tile choice: waste bounded by one hardware tile.
    tm = _pick_tile(B_pad, tm_cap, 8)
    tn = _pick_tile(OUT_pad, tn_cap, 256 if OUT_pad % 256 == 0 else 128)
    if IN_pad <= max(tk_cap, 2048):
        tk = IN_pad          # collapse the K grid axis: single reduction step
    else:
        tk = _pick_tile(IN_pad, tk_cap, 256 if IN_pad % 256 == 0 else 128)

    # If the whole problem is a single tile, split M so both TensorCores on a v7x
    # chip get a parallel tile (one extra ~0.35us grid step elsewhere, negligible).
    if (B_pad // tm) * (OUT_pad // tn) == 1 and B_pad % 16 == 0:
        tm = B_pad // 2

    # Small-shape fast path: only pad x when actually needed.
    x_p = x
    if (B_pad, IN_pad) != (B, IN):
        x_p = jnp.pad(x, ((0, B_pad - B), (0, IN_pad - IN)))

    grid = (B_pad // tm, OUT_pad // tn, IN_pad // tk)

    itemsize = jnp.dtype(x.dtype).itemsize
    # Double-buffered per-step footprint (inputs + output + bias) + f32 acc slack.
    est_vmem = 2 * itemsize * (tm * tk + tk * tn + tm * tn + tn) + tm * tn * 4
    vmem_limit = int(min(100 << 20, max(32 << 20, 2 * est_vmem)))

    flops = 2 * B_pad * OUT_pad * IN_pad
    bytes_accessed = itemsize * (
        B_pad * IN_pad * (OUT_pad // tn)        # x streamed once per N tile
        + IN_pad * OUT_pad * (B_pad // tm)      # W streamed once per M tile
        + B_pad * OUT_pad + OUT_pad
    )

    out_is_f32 = jnp.dtype(x.dtype) == jnp.float32
    kernel = _linear_kernel_f32 if out_is_f32 else _linear_kernel_acc
    scratch = [] if out_is_f32 else [pltpu.VMEM((tm, tn), jnp.float32)]

    out_p = pl.pallas_call(
        kernel,
        out_shape=jax.ShapeDtypeStruct((B_pad, OUT_pad), x.dtype),
        grid=grid,
        in_specs=[
            pl.BlockSpec((tm, tk), lambda i, j, k: (i, k)),   # x tile
            pl.BlockSpec((tk, tn), lambda i, j, k: (k, j)),   # pre-transposed W tile
            pl.BlockSpec((1, tn), lambda i, j, k: (0, j)),    # bias tile
        ],
        out_specs=pl.BlockSpec((tm, tn), lambda i, j, k: (i, j)),
        scratch_shapes=scratch,
        compiler_params=pltpu.CompilerParams(
            dimension_semantics=("parallel", "parallel", "arbitrary"),
            vmem_limit_bytes=vmem_limit,
        ),
        cost_estimate=pl.CostEstimate(
            flops=flops, transcendentals=0, bytes_accessed=bytes_accessed
        ),
    )(x_p, w_p, b_p)

    if (B_pad, OUT_pad) != (B, out_features):
        out_p = out_p[:B, :out_features]
    return out_p


def linear_forward(x, weight, bias):
    """One-shot convenience (PyTorch-layout weight). Prefer prepare_linear_params +
    linear_forward_prepared so the weight transpose/pad is not paid on every call."""
    w_p, b_p, out_features = prepare_linear_params(weight, bias)
    return linear_forward_prepared(x, w_p, b_p, out_features)


# ---------------------------------------------------------------------------
# demo / self-check
# ---------------------------------------------------------------------------
if __name__ == "__main__":
    # LinearRegressionModel(a, b): a = in_features, b = out_features.
    IN_FEATURES = 32
    OUT_FEATURES = 16
    BATCH = 8

    key = jax.random.PRNGKey(0)
    kx, kw, kb = jax.random.split(key, 3)

    # Deterministic init matching nn.Linear's uniform(-1/sqrt(a), 1/sqrt(a)).
    bound = 1.0 / (IN_FEATURES ** 0.5)
    weight = jax.random.uniform(kw, (OUT_FEATURES, IN_FEATURES),
                                dtype=jnp.float32, minval=-bound, maxval=bound)
    bias = jax.random.uniform(kb, (OUT_FEATURES,),
                              dtype=jnp.float32, minval=-bound, maxval=bound)
    x = jax.random.normal(kx, (BATCH, IN_FEATURES), dtype=jnp.float32)

    # Parameter prep (transpose + pad) done once at "model init", not per call.
    w_p, b_p, out_features = prepare_linear_params(weight, bias)
    fwd = jax.jit(linear_forward_prepared, static_argnames=("out_features",))

    out = jax.block_until_ready(fwd(x, w_p, b_p, out_features=out_features))

    # Cross-check against plain-JAX reference.
    ref = x @ weight.T + bias
    assert out.shape == (BATCH, OUT_FEATURES)
    assert jnp.allclose(out, ref, atol=1e-5, rtol=1e-5)

    print("KERNEL_OK")
</pallas_src>

<mosaic_0001>
module attributes {stable_mosaic.version = 11 : i64} {
  func.func @_linear_kernel_f32(%arg0: i32, %arg1: i32, %arg2: i32, %arg3: memref<8x128xf32, #tpu.memory_space<vmem>>, %arg4: memref<128x128xf32, #tpu.memory_space<vmem>>, %arg5: memref<1x128xf32, #tpu.memory_space<vmem>>, %arg6: memref<8x128xf32, #tpu.memory_space<vmem>>) attributes {dimension_semantics = [#tpu.dimension_semantics<parallel>, #tpu.dimension_semantics<parallel>, #tpu.dimension_semantics<arbitrary>], iteration_bounds = array<i64: 1, 1, 1>, scalar_prefetch = 0 : i64, scratch_operands = 0 : i64, tpu.core_type = #tpu.core_type<tc>, window_params = [{transform_indices = @transform_0, window_bounds = array<i64: 8, 128>}, {transform_indices = @transform_1, window_bounds = array<i64: 128, 128>}, {transform_indices = @transform_2, window_bounds = array<i64: 1, 128>}, {transform_indices = @transform_3, window_bounds = array<i64: 8, 128>}]} {
    %c0 = arith.constant 0 : index
    %c0_0 = arith.constant 0 : index
    %0 = vector.load %arg3[%c0, %c0_0] : memref<8x128xf32, #tpu.memory_space<vmem>>, vector<8x128xf32>
    %c0_1 = arith.constant 0 : index
    %c0_2 = arith.constant 0 : index
    %1 = vector.load %arg4[%c0_1, %c0_2] : memref<128x128xf32, #tpu.memory_space<vmem>>, vector<128x128xf32>
    %cst = arith.constant dense<0.000000e+00> : vector<8x128xf32>
    %2 = tpu.matmul %0, %1, %cst {dimension_numbers = #tpu.dot_dimension_numbers<[1], [0], [0], [1], [0, 0, 1, 1], [], []>} : vector<8x128xf32>, vector<128x128xf32>, vector<8x128xf32> -> vector<8x128xf32>
    %c0_i32 = arith.constant 0 : i32
    %3 = arith.cmpi eq, %arg2, %c0_i32 : i32
    %4 = arith.extui %3 : i1 to i32
    %c0_i32_3 = arith.constant 0 : i32
    %5 = arith.cmpi ne, %4, %c0_i32_3 : i32
    scf.if %5 {
      %c0_6 = arith.constant 0 : index
      %c0_7 = arith.constant 0 : index
      %9 = vector.load %arg5[%c0_6, %c0_7] : memref<1x128xf32, #tpu.memory_space<vmem>>, vector<1x128xf32>
      %10 = vector.broadcast %9 : vector<1x128xf32> to vector<8x128xf32>
      %11 = arith.addf %2, %10 : vector<8x128xf32>
      %c0_8 = arith.constant 0 : index
      %c0_9 = arith.constant 0 : index
      %12 = vector.load %arg6[%c0_8, %c0_9] : memref<8x128xf32, #tpu.memory_space<vmem>>, vector<8x128xf32>
      tpu.vector_store %arg6[%c0_8, %c0_9], %11 {strides = array<i32>} : memref<8x128xf32, #tpu.memory_space<vmem>>, vector<8x128xf32>,
    } else {
    }
    %c0_i32_4 = arith.constant 0 : i32
    %6 = arith.cmpi sgt, %arg2, %c0_i32_4 : i32
    %7 = arith.extui %6 : i1 to i32
    %c0_i32_5 = arith.constant 0 : i32
    %8 = arith.cmpi ne, %7, %c0_i32_5 : i32
    scf.if %8 {
      %c0_6 = arith.constant 0 : index
      %c0_7 = arith.constant 0 : index
      %9 = vector.load %arg6[%c0_6, %c0_7] : memref<8x128xf32, #tpu.memory_space<vmem>>, vector<8x128xf32>
      %10 = arith.addf %9, %2 : vector<8x128xf32>
      %c0_8 = arith.constant 0 : index
      %c0_9 = arith.constant 0 : index
      %11 = vector.load %arg6[%c0_8, %c0_9] : memref<8x128xf32, #tpu.memory_space<vmem>>, vector<8x128xf32>
      tpu.vector_store %arg6[%c0_8, %c0_9], %10 {strides = array<i32>} : memref<8x128xf32, #tpu.memory_space<vmem>>, vector<8x128xf32>,
    } else {
    }
    return
  }
  func.func @transform_0(%arg0: i32, %arg1: i32, %arg2: i32) -> (i32, i32) {
    %c0_i32 = arith.constant 0 : i32
    return %arg0, %arg2 : i32, i32
  }
  func.func @transform_1(%arg0: i32, %arg1: i32, %arg2: i32) -> (i32, i32) {
    %c0_i32 = arith.constant 0 : i32
    return %arg2, %arg1 : i32, i32
  }
  func.func @transform_2(%arg0: i32, %arg1: i32, %arg2: i32) -> (i32, i32) {
    %c0_i32 = arith.constant 0 : i32
    %c0_i32_0 = arith.constant 0 : i32
    return %c0_i32, %arg1 : i32, i32
  }
  func.func @transform_3(%arg0: i32, %arg1: i32, %arg2: i32) -> (i32, i32) {
    %c0_i32 = arith.constant 0 : i32
    return %arg0, %arg1 : i32, i32
  }
}

</mosaic_0001>

<llo_original>
// kernel: linear_forward_prepared.1
$region0: #{linear_forward_prepared.1}
  #allocation0 [shape = 'u32[]', space=smem, size = 0x4, offset = 0x4, fixed_abs, tag = 'smem constant byte address 0x4 - core index']
  #allocation1 [shape = 'u32[144,128]{1,0:T(1,128)}', space=vmem, size = 0x12000, scoped, tag = 'internal scratch']
  %s0 = inlined_call_operand.vmem [shape: f32[8,128], index: 0, kind: input, shape index: {}]
  %s1 = inlined_call_operand.hbm [shape: f32[128,128], index: 1, kind: input, shape index: {}]
  %s2 = inlined_call_operand.vmem [shape: f32[1,128], index: 2, kind: input, shape index: {}]
  %s3 = inlined_call_operand.hbm [shape: f32[8,128], index: 3, kind: output, shape index: {}]
  %s4 = sld [smem:[#allocation0]]
  $region34: #{linear_forward_prepared.1} parent=0
    _
  %s6 = ssub.s32 1, %s4
  %s7 = scalar_select 0, %s6, %s4
  $region1: #{linear_forward_prepared.1} parent=0
    #allocation2 [shape = 'u8[65536]{0}', space=vmem, size = 0x10000, scoped, tag = 'input window, operand 1, single buffered']
    #allocation3 [shape = 's32[1]{0}', space=sflag, size = 0x4, scoped, tag = 'scoped memory for linear_forward_prepared.1']
    #allocation4 [shape = 's32[1]{0}', space=sflag, size = 0x4, scoped, tag = 'scoped memory for linear_forward_prepared.1']
    #allocation5 [shape = 'u8[4096]{0}', space=vmem, size = 0x1000, scoped, tag = 'output window, operand 0, single buffered']
    %8 = vsyncpa [#allocation3], 0
    %9 = vsyncpa [#allocation4], 0
    // Predicated region
    $region2: #{linear_forward_prepared.1} parent=1 // pred_check
      _
    $region3: #{linear_forward_prepared.1} parent=1 // pred_check_branch
      %11 = sbr.rel (0) target = $region5
    $region4: #{linear_forward_prepared.1} parent=1 // pred_region
      _
    $region5: #{linear_forward_prepared.1} parent=1 // pred_fallthru
      _
    // Predicated region
    $region6: #{linear_forward_prepared.1} parent=1 // pred_check
      _
    $region7: #{linear_forward_prepared.1} parent=1 // pred_check_branch
      %13 = sbr.rel (0) target = $region9
    $region8: #{linear_forward_prepared.1} parent=1 // pred_region
      %s15 = ssub.s32 2048, 2048
      %16 = vsyncadd [#allocation3], %s15
      %s17 = sshll.u32 [#allocation2], 4
      %s18 = int_to_ptr.vmem [resolvable:$true] %s17
      %23 = dma.hbm_to_vmem [thread:$0]  %s1, 2048, %s18, [#allocation3], 128, 128, 8
    $region9: #{linear_forward_prepared.1} parent=1 // pred_fallthru
      _
    // Predicated region
    $region10: #{linear_forward_prepared.1} parent=1 // pred_check
      _
    $region11: #{linear_forward_prepared.1} parent=1 // pred_check_branch
      %25 = sbr.rel (0) target = $region13
    $region12: #{linear_forward_prepared.1} parent=1 // pred_region
      _
    $region13: #{linear_forward_prepared.1} parent=1 // pred_fallthru
      _
    // Predicated region
    $region14: #{linear_forward_prepared.1} parent=1 // pred_check
      _
    $region15: #{linear_forward_prepared.1} parent=1 // pred_check_branch
      %27 = sbr.rel (0) target = $region17
    $region16: #{linear_forward_prepared.1} parent=1 // pred_region
      %28 = dma.done [#allocation3], 2048
    $region17: #{linear_forward_prepared.1} parent=1 // pred_fallthru
      _
    %v29 = vld [vmem:[%s0] sm:$0xff]
    %v30 = vld [vmem:[#allocation2] sm:$0xff]
    %v31 = vld [vmem:[#allocation2 + $0x8] sm:$0xff]
    %v32 = vld [vmem:[#allocation2 + $0x10] sm:$0xff]
    %v33 = vld [vmem:[#allocation2 + $0x18] sm:$0xff]
    %v34 = vld [vmem:[#allocation2 + $0x20] sm:$0xff]
    %v35 = vld [vmem:[#allocation2 + $0x28] sm:$0xff]
    %v36 = vld [vmem:[#allocation2 + $0x30] sm:$0xff]
    %v37 = vld [vmem:[#allocation2 + $0x38] sm:$0xff]
    %v38 = vld [vmem:[#allocation2 + $0x40] sm:$0xff]
    %v39 = vld [vmem:[#allocation2 + $0x48] sm:$0xff]
    %v40 = vld [vmem:[#allocation2 + $0x50] sm:$0xff]
    %v41 = vld [vmem:[#allocation2 + $0x58] sm:$0xff]
    %v42 = vld [vmem:[#allocation2 + $0x60] sm:$0xff]
    %v43 = vld [vmem:[#allocation2 + $0x68] sm:$0xff]
    %v44 = vld [vmem:[#allocation2 + $0x70] sm:$0xff]
    %v45 = vld [vmem:[#allocation2 + $0x78] sm:$0xff]
    %46 = vmatprep.subr.mxu0 0.0
    %47 = vmatpush1.msra.mxu0 %v30
    %48 = vmatprep.subr.mxu0 0.0
    %49 = vmatpush1.msra.mxu0 %v31
    %50 = vmatprep.subr.mxu0 0.0
    %51 = vmatpush1.msra.mxu0 %v32
    %52 = vmatprep.subr.mxu0 0.0
    %53 = vmatpush1.msra.mxu0 %v33
    %54 = vmatprep.subr.mxu0 0.0
    %55 = vmatpush1.msra.mxu0 %v34
    %56 = vmatprep.subr.mxu0 0.0
    %57 = vmatpush1.msra.mxu0 %v35
    %58 = vmatprep.subr.mxu0 0.0
    %59 = vmatpush1.msra.mxu0 %v36
    %60 = vmatprep.subr.mxu0 0.0
    %61 = vmatpush1.msra.mxu0 %v37
    %62 = vmatprep.subr.mxu0 0.0
    %63 = vmatpush1.msra.mxu0 %v38
    %64 = vmatprep.subr.mxu0 0.0
    %65 = vmatpush1.msra.mxu0 %v39
    %66 = vmatprep.subr.mxu0 0.0
    %67 = vmatpush1.msra.mxu0 %v40
    %68 = vmatprep.subr.mxu0 0.0
    %69 = vmatpush1.msra.mxu0 %v41
    %70 = vmatprep.subr.mxu0 0.0
    %71 = vmatpush1.msra.mxu0 %v42
    %72 = vmatprep.subr.mxu0 0.0
    %73 = vmatpush1.msra.mxu0 %v43
    %74 = vmatprep.subr.mxu0 0.0
    %75 = vmatpush1.msra.mxu0 %v44
    %76 = vmatprep.subr.mxu0 0.0
    %77 = vmatpush1.msra.mxu0 %v45
    %78 = vmatprep.subr.mxu0 0.0
    %79 = vmatpush1.msra.mxu0 0.0
    %80 = vmatprep.subr.mxu0 0.0
    %81 = vmatpush1.msra.mxu0 0.0
    %82 = vmatprep.subr.mxu0 0.0
    %83 = vmatpush1.msra.mxu0 0.0
    %84 = vmatprep.subr.mxu0 0.0
    %85 = vmatpush1.msra.mxu0 0.0
    %86 = vmatprep.subr.mxu0 0.0
    %87 = vmatpush1.msra.mxu0 0.0
    %88 = vmatprep.subr.mxu0 0.0
    %89 = vmatpush1.msra.mxu0 0.0
    %90 = vmatprep.subr.mxu0 0.0
    %91 = vmatpush1.msra.mxu0 0.0
    %92 = vmatprep.subr.mxu0 0.0
    %93 = vmatpush1.msra.mxu0 0.0
    %94 = vmatprep.subr.mxu0 0.0
    %95 = vmatpush1.msra.mxu0 0.0
    %96 = vmatprep.subr.mxu0 0.0
    %97 = vmatpush1.msra.mxu0 0.0
    %98 = vmatprep.subr.mxu0 0.0
    %99 = vmatpush1.msra.mxu0 0.0
    %100 = vmatprep.subr.mxu0 0.0
    %101 = vmatpush1.msra.mxu0 0.0
    %102 = vmatprep.subr.mxu0 0.0
    %103 = vmatpush1.msra.mxu0 0.0
    %104 = vmatprep.subr.mxu0 0.0
    %105 = vmatpush1.msra.mxu0 0.0
    %106 = vmatprep.subr.mxu0 0.0
    %107 = vmatpush1.msra.mxu0 0.0
    %108 = vmatprep.subr.mxu0 0.0
    %109 = vmatpush1.msra.mxu0 0.0
    %110 = vmatprep.mubr.f32.mxu0 0.0
    %111 = vmatmul.mubr.f32.gmra.mrb[0].mxu0 %v29
    %v112 = vpop.f32.mrb[0].mxu0
    %v113 = vadd.f32 0.0, %v112
    %v114 = vpop.f32.mrb[0].mxu0
    %115 = vdwg.mxu0
    %p116 = scmp.eq.s32.totalorder 0, 0
    // Predicated region
    $region18: #{linear_forward_prepared.1} parent=1 // pred_check
      %p117 = pneg %p116
    $region19: #{linear_forward_prepared.1} parent=1 // pred_check_branch
      %119 = sbr.rel (%p117) target = $region21
    $region20: #{linear_forward_prepared.1} parent=1 // pred_region
      %v120 = vld [vmem:[%s2] sm:$0x1]
      %v122 = vlaneseq
      %v123 = vshrl.u32 %v122, 7
      %v124 = vsub.s32 0, %v123
      %v125 = vrot.slane %v120, %v124
      %v127 = vadd.f32 %v113, %v125
      %128 = vst [vmem:[#allocation5] sm:$0xff] %v127
    $region21: #{linear_forward_prepared.1} parent=1 // pred_fallthru
      _
    %p129 = scmp.gt.s32.totalorder 0, 0
    // Predicated region
    $region22: #{linear_forward_prepared.1} parent=1 // pred_check
      %p130 = pneg %p129
    $region23: #{linear_forward_prepared.1} parent=1 // pred_check_branch
      %132 = sbr.rel (%p130) target = $region25
    $region24: #{linear_forward_prepared.1} parent=1 // pred_region
      %v133 = vld [vmem:[#allocation5] sm:$0xff]
      %v134 = vadd.f32 %v133, %v113
      %135 = vst [vmem:[#allocation5] sm:$0xff] %v134
    $region25: #{linear_forward_prepared.1} parent=1 // pred_fallthru
      _
    // Predicated region
    $region26: #{linear_forward_prepared.1} parent=1 // pred_check
      _
    $region27: #{linear_forward_prepared.1} parent=1 // pred_check_branch
      %137 = sbr.rel (0) target = $region29
    $region28: #{linear_forward_prepared.1} parent=1 // pred_region
      %s139 = ssub.s32 128, 128
      %140 = vsyncadd [#allocation4], %s139
      %s142 = sshll.u32 [#allocation5], 4
      %s143 = int_to_ptr.vmem [resolvable:$true] %s142
      %145 = dma.vmem_to_hbm [thread:$0]  %s143, 128, %s3, [#allocation4]
    $region29: #{linear_forward_prepared.1} parent=1 // pred_fallthru
      _
    // Predicated region
    $region30: #{linear_forward_prepared.1} parent=1 // pred_check
      _
    $region31: #{linear_forward_prepared.1} parent=1 // pred_check_branch
      %147 = sbr.rel (0) target = $region33
    $region32: #{linear_forward_prepared.1} parent=1 // pred_region
      %148 = dma.done [#allocation4], 128
    $region33: #{linear_forward_prepared.1} parent=1 // pred_fallthru
      _
    %149 = vsyncpa [#allocation3], 1
    %150 = vsyncpa [#allocation4], 1

</llo_original>
